<compile_context>
chip_gen: v5e
topology: v5e:2x2
jax: 0.10.0
libtpu: 0.0.40
codegen_flags: <defaults>
</compile_context>

<pallas_src>
import jax
import jax.numpy as jnp
from jax.experimental import pallas as pl
from jax.experimental.pallas import tpu as pltpu


# ---------------------------------------------------------------------------
# Path A: zero-copy identity (output aliases the input HBM buffer).
# ---------------------------------------------------------------------------
def _noop_alias_kernel(x_hbm_ref, o_hbm_ref):
    # The output buffer *is* the input buffer (input_output_aliases={0: 0}),
    # so the bytes are already in place: intentionally no loads, stores or
    # DMAs -> zero HBM traffic, fixed few-microsecond dispatch on every chip.
    del x_hbm_ref, o_hbm_ref


def _alias_identity(x):
    return pl.pallas_call(
        _noop_alias_kernel,
        out_shape=jax.ShapeDtypeStruct(x.shape, x.dtype),
        in_specs=[pl.BlockSpec(memory_space=pl.ANY)],
        out_specs=pl.BlockSpec(memory_space=pl.ANY),
        input_output_aliases={0: 0},
        compiler_params=pltpu.CompilerParams(has_side_effects=True),
    )(x)


# Donation makes the alias real; without it XLA inserts a defensive copy that
# silently re-adds the full HBM write the alias was supposed to elide.
_alias_identity_jit = jax.jit(_alias_identity, donate_argnums=(0,))


# ---------------------------------------------------------------------------
# Path B: single HBM -> HBM DMA copy (input preserved, no VMEM round-trip).
# ---------------------------------------------------------------------------
def _dma_copy_kernel(x_hbm_ref, o_hbm_ref, sem):
    cp = pltpu.make_async_copy(x_hbm_ref, o_hbm_ref, sem)
    cp.start()
    cp.wait()


def _dma_identity(x):
    return pl.pallas_call(
        _dma_copy_kernel,
        out_shape=jax.ShapeDtypeStruct(x.shape, x.dtype),
        in_specs=[pl.BlockSpec(memory_space=pl.ANY)],
        out_specs=pl.BlockSpec(memory_space=pl.ANY),
        scratch_shapes=[pltpu.SemaphoreType.DMA],
        compiler_params=pltpu.CompilerParams(has_side_effects=True),
    )(x)


_dma_identity_jit = jax.jit(_dma_identity)


# ---------------------------------------------------------------------------
# Path C: tiled VMEM copy (last-resort fallback; conservative, known-good).
# ---------------------------------------------------------------------------
_TILE_BLOCK_BYTES = 4 * 1024 * 1024   # per-buffer VMEM block budget


def _copy_kernel(x_ref, o_ref):
    o_ref[...] = x_ref[...]


def _tiled_identity_2d(x2d):
    R, C = x2d.shape
    itemsize = jnp.dtype(x2d.dtype).itemsize
    pack = {4: 8, 2: 16, 1: 32}.get(itemsize, 8)   # sublane packing per dtype

    rows_budget = max(pack, _TILE_BLOCK_BYTES // max(1, C * itemsize))
    n_blocks = max(1, pl.cdiv(R, rows_budget))
    # Balanced, sublane-aligned row tiles (>=2 roughly equal blocks whenever
    # the slab exceeds one block, so both v7x TensorCores get work).
    tile_r = min(R, pl.cdiv(pl.cdiv(R, n_blocks), pack) * pack)

    return pl.pallas_call(
        _copy_kernel,
        out_shape=jax.ShapeDtypeStruct((R, C), x2d.dtype),
        grid=(pl.cdiv(R, tile_r),),
        in_specs=[pl.BlockSpec((tile_r, C), lambda i: (i, 0))],
        out_specs=pl.BlockSpec((tile_r, C), lambda i: (i, 0)),
        compiler_params=pltpu.CompilerParams(
            dimension_semantics=("parallel",),
            vmem_limit_bytes=48 * 1024 * 1024,
        ),
    )(x2d)


def _tiled_identity(x):
    orig_shape = x.shape
    total = x.size
    # Lane-dense 2D view: widest 128-multiple lane width that divides the
    # element count and still leaves >= 8 rows (full unmasked vst rows, wide
    # DMA bursts).  Otherwise use one full-array block (full-dim exemption).
    lane = 0
    for cand in (32768, 16384, 8192, 4096, 2048, 1024, 512, 256, 128):
        if total % cand == 0 and total // cand >= 8:
            lane = cand
            break
    x2d = x.reshape(total // lane, lane) if lane else x.reshape(1, total)
    return _tiled_identity_2d(x2d).reshape(orig_shape)


# ---------------------------------------------------------------------------
# Public forward
# ---------------------------------------------------------------------------
_FAILED_PATHS = set()   # paths that failed to lower/compile on this machine


def base_model_forward(x, *, donate=True):
    """Identity forward for the abstract BaseModel, as a Pallas kernel.

    donate=True (default): fastest path; the input buffer is donated and the
    output aliases it (zero HBM traffic).  donate=False preserves the input
    (single HBM->HBM DMA copy).
    """
    if x.size == 0:
        return x

    if donate and "alias" not in _FAILED_PATHS:
        try:
            return _alias_identity_jit(x)
        except Exception:          # fall back if this lowering is rejected
            _FAILED_PATHS.add("alias")

    if "dma" not in _FAILED_PATHS:
        try:
            return _dma_identity_jit(x)
        except Exception:
            _FAILED_PATHS.add("dma")

    return _tiled_identity(x)


if __name__ == "__main__":
    key = jax.random.PRNGKey(0)
    # Small NCHW-style example input consistent with a vision-style model.
    x = jax.random.normal(key, (2, 4, 16, 16), dtype=jnp.float32)
    x_host = jax.device_get(x)    # snapshot: x is donated to the forward below

    # Default (zero-copy, donating) path.
    y = base_model_forward(x)
    y = jax.block_until_ready(y)
    assert y.shape == (2, 4, 16, 16)
    assert y.dtype == jnp.float32
    assert bool(jnp.array_equal(y, jnp.asarray(x_host)))

    # Input-preserving path (HBM->HBM DMA copy).
    x2 = jnp.asarray(x_host)
    y2 = jax.block_until_ready(base_model_forward(x2, donate=False))
    assert bool(jnp.array_equal(y2, jnp.asarray(x_host)))
    assert bool(jnp.array_equal(x2, jnp.asarray(x_host)))   # input untouched

    # num_params analogue: BaseModel declares no parameters.
    num_params = 0
    assert num_params == 0

    print("KERNEL_OK")
</pallas_src>

<mosaic_0001>
module attributes {stable_mosaic.version = 11 : i64} {
  func.func @_noop_alias_kernel(%arg0: memref<2x4x16x16xf32, #tpu.memory_space<any>>, %arg1: memref<2x4x16x16xf32, #tpu.memory_space<any>>) attributes {dimension_semantics = [], scalar_prefetch = 0 : i64, scratch_operands = 0 : i64, tpu.core_type = #tpu.core_type<tc>} {
    return
  }
}

module attributes {stable_mosaic.version = 11 : i64} {
  func.func @_dma_copy_kernel(%arg0: memref<2x4x16x16xf32, #tpu.memory_space<any>>, %arg1: memref<2x4x16x16xf32, #tpu.memory_space<any>>, %arg2: memref<!tpu.dma_semaphore, #tpu.memory_space<semaphore_mem>>) attributes {dimension_semantics = [], scalar_prefetch = 0 : i64, scratch_operands = 1 : i64, tpu.core_type = #tpu.core_type<tc>} {
    tpu.enqueue_dma source(%arg0 : memref<2x4x16x16xf32, #tpu.memory_space<any>>) target(%arg1 : memref<2x4x16x16xf32, #tpu.memory_space<any>>) target_semaphore(%arg2 : memref<!tpu.dma_semaphore, #tpu.memory_space<semaphore_mem>>)
    tpu.wait_dma2 semaphore(%arg2 : memref<!tpu.dma_semaphore, #tpu.memory_space<semaphore_mem>>) src(%arg0 : memref<2x4x16x16xf32, #tpu.memory_space<any>>) dst(%arg1 : memref<2x4x16x16xf32, #tpu.memory_space<any>>)
    return
  }
}

module attributes {stable_mosaic.version = 11 : i64} {
  func.func @_copy_kernel(%arg0: i32, %arg1: memref<8x256xf32, #tpu.memory_space<vmem>>, %arg2: memref<8x256xf32, #tpu.memory_space<vmem>>) attributes {dimension_semantics = [#tpu.dimension_semantics<parallel>], iteration_bounds = array<i64: 1>, scalar_prefetch = 0 : i64, scratch_operands = 0 : i64, tpu.core_type = #tpu.core_type<tc>, window_params = [{transform_indices = @transform_0, window_bounds = array<i64: 8, 256>}, {transform_indices = @transform_1, window_bounds = array<i64: 8, 256>}]} {
    %c0 = arith.constant 0 : index
    %c0_0 = arith.constant 0 : index
    %0 = vector.load %arg1[%c0, %c0_0] : memref<8x256xf32, #tpu.memory_space<vmem>>, vector<8x256xf32>
    %c0_1 = arith.constant 0 : index
    %c0_2 = arith.constant 0 : index
    %1 = vector.load %arg2[%c0_1, %c0_2] : memref<8x256xf32, #tpu.memory_space<vmem>>, vector<8x256xf32>
    tpu.vector_store %arg2[%c0_1, %c0_2], %0 {strides = array<i32>} : memref<8x256xf32, #tpu.memory_space<vmem>>, vector<8x256xf32>,
    return
  }
  func.func @transform_0(%arg0: i32) -> (i32, i32) {
    %c0_i32 = arith.constant 0 : i32
    %c0_i32_0 = arith.constant 0 : i32
    return %arg0, %c0_i32 : i32, i32
  }
  func.func @transform_1(%arg0: i32) -> (i32, i32) {
    %c0_i32 = arith.constant 0 : i32
    %c0_i32_0 = arith.constant 0 : i32
    return %arg0, %c0_i32 : i32, i32
  }
}

</mosaic_0001>

<llo_original>
// kernel: _alias_identity.1
$region0: #{_alias_identity.1}
  #allocation0 [shape = 'u32[]', space=smem, size = 0x4, offset = 0x4, fixed_abs, tag = 'smem constant byte address 0x4 - core index']
  #allocation1 [shape = 'u32[72,128]{1,0:T(1,128)}', space=vmem, size = 0x9000, scoped, tag = 'internal scratch']
  %s0 = inlined_call_operand.hbm [shape: f32[2,4,16,16], index: 0, kind: input, shape index: {}, may-alias: {0,1}]
  %s1 = inlined_call_operand.hbm [shape: f32[2,4,16,16], index: 1, kind: output, shape index: {}, may-alias: {0,1}]
  %s2 = sld [smem:[#allocation0]]
  $region2: #{_alias_identity.1} parent=0
    _
  %s4 = ssub.s32 1, %s2
  %s5 = scalar_select 0, %s4, %s2

// kernel: _dma_identity.1
$region0: #{_dma_identity.1}
  #allocation0 [shape = 'u32[]', space=smem, size = 0x4, offset = 0x4, fixed_abs, tag = 'smem constant byte address 0x4 - core index']
  #allocation1 [shape = 'u32[72,128]{1,0:T(1,128)}', space=vmem, size = 0x9000, scoped, tag = 'internal scratch']
  #allocation2 [shape = 's32[1]{0}', space=sflag, size = 0x4, scoped, tag = 'scratch operand']
  #allocation3 [shape = 's32[]', space=sflag, size = 0x4, offset = 0, fixed_abs, tag = 'sflag constant byte address 0x0 - dummy sync flag']
  #allocation4 [shape = 'u32[0]{0}', space=smem, size = 0, offset = 0, fixed_abs, tag = 'smem constant byte address 0x0 - null']
  %s0 = inlined_call_operand.hbm [shape: f32[2,4,16,16], index: 0, kind: input, shape index: {}]
  %s1 = inlined_call_operand.hbm [shape: f32[2,4,16,16], index: 1, kind: output, shape index: {}]
  %s2 = sld [smem:[#allocation0]]
  $region2: #{_dma_identity.1} parent=0
    _
  %s4 = ssub.s32 1, %s2
  %s5 = scalar_select 0, %s4, %s2
  %s7 = sshll.u32 1, 14
  %s8 = sxor.u32 4294967295, %s7
  %s10 = sshll.u32 %s0, 4
  %s11 = int_to_ptr.hbm [resolvable:$true] %s10
  %s12 = sshll.u32 %s1, 4
  %s13 = int_to_ptr.hbm [resolvable:$true] %s12
  %16 = dma.general %s11, 2048, %s13, [#allocation2], [#allocation3], [#allocation4], 0, 0
  %s17 = smul.u32 2, 4
  %s18 = smul.u32 %s17, 16
  %s19 = smul.u32 %s18, 1
  %s20 = sshll.u32 %s19, 4
  %21 = dma.done [#allocation2], %s20
  %22 = vsyncmov [#allocation2]
  %s23 = vpop.sfrf %22
  %p24 = scmp.eq.s32.totalorder %s23, 0
  %p25 = pneg %p24
  %27 = shalt.err (%p25)

// kernel: tpu_custom_call.1
$region0: #{tpu_custom_call.1}
  #allocation0 [shape = 'u32[]', space=smem, size = 0x4, offset = 0x4, fixed_abs, tag = 'smem constant byte address 0x4 - core index']
  #allocation1 [shape = 'u32[72,128]{1,0:T(1,128)}', space=vmem, size = 0x9000, scoped, tag = 'internal scratch']
  %s0 = inlined_call_operand.hbm [shape: f32[8,256], index: 0, kind: input, shape index: {}]
  %s1 = inlined_call_operand.hbm [shape: f32[8,256], index: 1, kind: output, shape index: {}]
  %s2 = sld [smem:[#allocation0]]
  $region18: #{tpu_custom_call.1} parent=0
    _
  %s4 = ssub.s32 1, %s2
  %s5 = scalar_select 0, %s4, %s2
  $region1: #{tpu_custom_call.1} parent=0
    #allocation2 [shape = 'u8[8192]{0}', space=vmem, size = 0x2000, scoped, tag = 'input window, operand 0, single buffered']
    #allocation3 [shape = 's32[1]{0}', space=sflag, size = 0x4, scoped, tag = 'scoped memory for tpu_custom_call.1']
    #allocation4 [shape = 's32[1]{0}', space=sflag, size = 0x4, scoped, tag = 'scoped memory for tpu_custom_call.1']
    #allocation5 [shape = 'u8[8192]{0}', space=vmem, size = 0x2000, scoped, tag = 'output window, operand 0, single buffered']
    %6 = vsyncpa [#allocation3], 0
    %7 = vsyncpa [#allocation4], 0
    // Predicated region
    $region2: #{tpu_custom_call.1} parent=1 // pred_check
      _
    $region3: #{tpu_custom_call.1} parent=1 // pred_check_branch
      %9 = sbr.rel (0) target = $region5
    $region4: #{tpu_custom_call.1} parent=1 // pred_region
      %11 = vsyncadd [#allocation3], 0
      %s13 = sshll.u32 %s0, 4
      %s14 = int_to_ptr.hbm [resolvable:$true] %s13
      %s15 = sshll.u32 [#allocation2], 4
      %s16 = int_to_ptr.vmem [resolvable:$true] %s15
      %18 = dma.hbm_to_vmem [thread:$0]  %s14, 256, %s16, [#allocation3]
    $region5: #{tpu_custom_call.1} parent=1 // pred_fallthru
      _
    // Predicated region
    $region6: #{tpu_custom_call.1} parent=1 // pred_check
      _
    $region7: #{tpu_custom_call.1} parent=1 // pred_check_branch
      %20 = sbr.rel (0) target = $region9
    $region8: #{tpu_custom_call.1} parent=1 // pred_region
      %22 = dma.done [#allocation3], 256
    $region9: #{tpu_custom_call.1} parent=1 // pred_fallthru
      _
    %v23 = vld [vmem:[#allocation2] sm:$0xff]
    %v24 = vld [vmem:[#allocation2 + $0x8] sm:$0xff]
    %25 = vst [vmem:[#allocation5] sm:$0xff] %v23
    %26 = vst [vmem:[#allocation5 + $0x8] sm:$0xff] %v24
    // Predicated region
    $region10: #{tpu_custom_call.1} parent=1 // pred_check
      _
    $region11: #{tpu_custom_call.1} parent=1 // pred_check_branch
      %28 = sbr.rel (0) target = $region13
    $region12: #{tpu_custom_call.1} parent=1 // pred_region
      %30 = vsyncadd [#allocation4], 0
      %s32 = sshll.u32 [#allocation5], 4
      %s33 = int_to_ptr.vmem [resolvable:$true] %s32
      %s34 = sshll.u32 %s1, 4
      %s35 = int_to_ptr.hbm [resolvable:$true] %s34
      %37 = dma.vmem_to_hbm [thread:$0]  %s33, 256, %s35, [#allocation4]
    $region13: #{tpu_custom_call.1} parent=1 // pred_fallthru
      _
    // Predicated region
    $region14: #{tpu_custom_call.1} parent=1 // pred_check
      _
    $region15: #{tpu_custom_call.1} parent=1 // pred_check_branch
      %39 = sbr.rel (0) target = $region17
    $region16: #{tpu_custom_call.1} parent=1 // pred_region
      %41 = dma.done [#allocation4], 256
    $region17: #{tpu_custom_call.1} parent=1 // pred_fallthru
      _
    %42 = vsyncpa [#allocation3], 1
    %43 = vsyncpa [#allocation4], 1

</llo_original>
